<compile_context>
chip_gen: v6e
topology: v6e:2x2x1
jax: 0.10.0
libtpu: 0.0.40
codegen_flags: <defaults>
</compile_context>

<pallas_src>
import functools

import jax
import jax.numpy as jnp
from jax.experimental import pallas as pl
from jax.experimental.pallas import tpu as pltpu

LANE = 128      # lane width; MXU-native K/N padding (keep 128 even on v6e/v7x —
                # wider 256 padding only helps when num_hidden > 128)
SUBLANE = 8

_HAS_BUFFERED = hasattr(pl, "Buffered")


def _round_up(x, m):
    return (x + m - 1) // m * m


def _mlp_kernel(x_ref,
                w1_ref, b1_ref,
                w23_ref, b23_ref,
                w45_ref, b45_ref,
                wfc_ref, bfc_ref,
                out_ref):
    """Fused folded MLP: 4 serial MXU matmuls per (TILE_M, ·) batch tile."""
    cdt = w1_ref.dtype                     # MXU operand dtype (bf16 fast path / f32 check path)
    x = x_ref[...].astype(cdt)             # no-op when x was pre-cast outside

    h = jnp.dot(x, w1_ref[...], preferred_element_type=jnp.float32)
    h = jnp.maximum(h + b1_ref[...], 0.0)                 # relu(linear1)

    h = jnp.dot(h.astype(cdt), w23_ref[...], preferred_element_type=jnp.float32)
    h = jnp.maximum(h + b23_ref[...], 0.0)                # relu(linear3(linear2))

    h = jnp.dot(h.astype(cdt), w45_ref[...], preferred_element_type=jnp.float32)
    h = jnp.maximum(h + b45_ref[...], 0.0)                # relu(linear5(linear4))

    out = jnp.dot(h.astype(cdt), wfc_ref[...], preferred_element_type=jnp.float32)
    out_ref[...] = (out + bfc_ref[...]).astype(out_ref.dtype)   # fc (no activation)


def prepare_params(params, compute_dtype=jnp.bfloat16):
    """Fold linear2@linear3 / linear4@linear5, pad every dim to a lane multiple,
    and cast the matmul weights to the MXU compute dtype. Run once per model."""
    w1, b1 = params["w1"], params["b1"]
    w23 = params["w2"] @ params["w3"]
    b23 = params["b2"] @ params["w3"] + params["b3"]
    w45 = params["w4"] @ params["w5"]
    b45 = params["b4"] @ params["w5"] + params["b5"]
    wfc, bfc = params["wfc"], params["bfc"]

    D, Hdim = w1.shape
    C = wfc.shape[1]
    Dp, Hp, Cp = _round_up(D, LANE), _round_up(Hdim, LANE), _round_up(C, LANE)

    def pad_w(w, rp, cp):
        r, c = w.shape
        return jnp.pad(w, ((0, rp - r), (0, cp - c))).astype(compute_dtype)

    def pad_b(b, cp):  # biases stay f32 (added to the f32 accumulator)
        return jnp.pad(b, ((0, 0), (0, cp - b.shape[1]))).astype(jnp.float32)

    return {
        "w1": pad_w(w1, Dp, Hp), "b1": pad_b(b1, Hp),
        "w23": pad_w(w23, Hp, Hp), "b23": pad_b(b23, Hp),
        "w45": pad_w(w45, Hp, Hp), "b45": pad_b(b45, Hp),
        "wfc": pad_w(wfc, Hp, Cp), "bfc": pad_b(bfc, Cp),
    }


def _resident_spec(shape):
    """Weight/bias block: same block at every grid step -> DMA'd once, VMEM-resident.
    Single-buffered (Buffered(1)) so residents don't burn 2x VMEM (matters on v7x)."""
    if _HAS_BUFFERED:
        return pl.BlockSpec(shape, lambda i: (0, 0), pipeline_mode=pl.Buffered(1))
    return pl.BlockSpec(shape, lambda i: (0, 0))


def _vmem_budget_bytes():
    """~75% of this chip's physical VMEM (64 MiB v7x -> 48 MiB; 128 MiB v5e/v6e -> 96 MiB).
    Falls back to a v7x-safe 48 MiB if the query is unavailable."""
    try:
        cap = pltpu.get_tpu_info().vmem_capacity_bytes
    except Exception:
        cap = 64 * 1024 * 1024
    return int(cap) * 3 // 4


@functools.partial(jax.jit, static_argnames=("num_classes", "tile_m", "out_dtype"))
def mlp_factorized_forward(x, prepared, *, num_classes, tile_m=None, out_dtype=None):
    """x: (B, C, H, W) or (B, input_dim); prepared: output of prepare_params."""
    B = x.shape[0]
    x2d = x.reshape(B, -1)                       # torch.flatten(x, 1), row-major
    D = x2d.shape[1]

    Dp, Hp = prepared["w1"].shape
    Cp = prepared["wfc"].shape[1]
    compute_dtype = prepared["w1"].dtype
    cbytes = compute_dtype.itemsize
    out_dtype = jnp.dtype(out_dtype) if out_dtype is not None else jnp.dtype(jnp.float32)
    obytes = out_dtype.itemsize

    # bf16 packs 2 rows/sublane: 16-row alignment keeps x loads at the native tile.
    row_align = 16 if cbytes < 4 else SUBLANE

    # Single-buffered resident weights (compute dtype) + f32 biases.
    w_bytes = (Dp * Hp + 2 * Hp * Hp + Hp * Cp) * cbytes + (3 * Hp + Cp) * 4

    budget = _vmem_budget_bytes()

    # Bytes/elt of the x tile as the kernel will see it (cast to compute dtype
    # whenever feature padding is required; conservative otherwise).
    xb = x2d.dtype.itemsize if Dp == D else cbytes

    def fits(t):
        # residents (1x) + double-buffered x and out tiles + small slack.
        return w_bytes + 2 * t * (Dp * xb + Cp * obytes) + (2 << 20) <= budget

    if tile_m is None:
        # Largest batch tile that fits the VMEM budget (bigger tiles amortize the
        # ~0.35us/step overhead and push the mem-bound x path toward HBM roofline).
        b_cap = _round_up(B, row_align)
        chosen = None
        for t in (1024, 512, 256, 128, 64, 32, 16, 8):
            if row_align <= t <= b_cap and fits(t):
                chosen = t
                break
        tile_m = chosen if chosen is not None else row_align

        # Keep >= 2 grid steps when possible so the "parallel" batch axis
        # actually feeds both v7x TensorCores (no effect on 1-TC v5e/v6e).
        if _round_up(B, tile_m) // tile_m == 1 and tile_m >= 2 * row_align:
            tile_m = _round_up(tile_m // 2, row_align)

    Bp = _round_up(B, tile_m)

    # --- x staging: at most ONE extra HBM pass, in the narrow dtype ------------
    pad_rows, pad_cols = Bp - B, Dp - D
    if pad_rows or pad_cols:
        if x2d.dtype != compute_dtype:
            x2d = x2d.astype(compute_dtype)          # cast BEFORE padding (fused pass)
        x2d = jnp.pad(x2d, ((0, pad_rows), (0, pad_cols)))
    # else: pass x straight through; the kernel casts the tile in VMEM.

    flops = 2 * Bp * (Dp * Hp + 2 * Hp * Hp + Hp * Cp)
    bytes_accessed = (Bp * Dp * x2d.dtype.itemsize
                      + (Dp * Hp + 2 * Hp * Hp + Hp * Cp) * cbytes
                      + (3 * Hp + Cp) * 4
                      + Bp * Cp * obytes)
    cost = pl.CostEstimate(flops=flops, transcendentals=0,
                           bytes_accessed=bytes_accessed)

    out_p = pl.pallas_call(
        _mlp_kernel,
        out_shape=jax.ShapeDtypeStruct((Bp, Cp), out_dtype),
        grid=(Bp // tile_m,),
        in_specs=[
            pl.BlockSpec((tile_m, Dp), lambda i: (i, 0)),   # x batch tile (pipelined)
            _resident_spec((Dp, Hp)), _resident_spec((1, Hp)),   # w1, b1
            _resident_spec((Hp, Hp)), _resident_spec((1, Hp)),   # w23, b23
            _resident_spec((Hp, Hp)), _resident_spec((1, Hp)),   # w45, b45
            _resident_spec((Hp, Cp)), _resident_spec((1, Cp)),   # wfc, bfc
        ],
        out_specs=pl.BlockSpec((tile_m, Cp), lambda i: (i, 0)),
        compiler_params=pltpu.CompilerParams(
            dimension_semantics=("parallel",),   # shard batch grid over v7x's 2 TCs
            vmem_limit_bytes=budget,             # <=48 MiB on v7x, up to 96 MiB on v5e/v6e
        ),
        cost_estimate=cost,
    )(x2d,
      prepared["w1"], prepared["b1"],
      prepared["w23"], prepared["b23"],
      prepared["w45"], prepared["b45"],
      prepared["wfc"], prepared["bfc"])

    return out_p[:B, :num_classes]


def init_params(key, input_dim, num_hidden, num_classes):
    """Synthetic init mimicking nn.Linear default (uniform +-1/sqrt(fan_in)).
    Weights stored pre-transposed as (in_features, out_features); biases (1, out)."""
    dims = [
        ("1", input_dim, num_hidden),
        ("2", num_hidden, num_hidden),
        ("3", num_hidden, num_hidden),
        ("4", num_hidden, num_hidden),
        ("5", num_hidden, num_hidden),
        ("fc", num_hidden, num_classes),
    ]
    params = {}
    for name, fan_in, fan_out in dims:
        key, kw, kb = jax.random.split(key, 3)
        bound = 1.0 / jnp.sqrt(jnp.float32(fan_in))
        params[f"w{name}"] = jax.random.uniform(
            kw, (fan_in, fan_out), jnp.float32, minval=-bound, maxval=bound)
        params[f"b{name}"] = jax.random.uniform(
            kb, (1, fan_out), jnp.float32, minval=-bound, maxval=bound)
    return params


def reference_forward(x, params):
    """Pure-JAX f32 reference matching the PyTorch module exactly (no folding)."""
    h = x.reshape(x.shape[0], -1)
    h = jnp.maximum(h @ params["w1"] + params["b1"], 0.0)
    h = h @ params["w2"] + params["b2"]
    h = jnp.maximum(h @ params["w3"] + params["b3"], 0.0)
    h = h @ params["w4"] + params["b4"]
    h = jnp.maximum(h @ params["w5"] + params["b5"], 0.0)
    return h @ params["wfc"] + params["bfc"]


if __name__ == "__main__":
    key = jax.random.PRNGKey(0)
    k_x, k_p = jax.random.split(key)

    # Small image-like input (2, 4, 16, 16) -> input_dim = 1024
    B, C, H, W = 2, 4, 16, 16
    input_dim = C * H * W
    num_hidden = 32
    num_classes = 10

    x = jax.random.normal(k_x, (B, C, H, W), dtype=jnp.float32)
    params = init_params(k_p, input_dim, num_hidden, num_classes)
    ref = reference_forward(x, params)

    # f32 compute path: matches the PyTorch-faithful reference up to the exact
    # affine folding (fp reassociation only).
    prep_f32 = prepare_params(params, compute_dtype=jnp.float32)
    out_f32 = jax.block_until_ready(
        mlp_factorized_forward(x, prep_f32, num_classes=num_classes))
    assert out_f32.shape == (B, num_classes)
    assert jnp.allclose(out_f32, ref, atol=1e-4, rtol=1e-4), "f32 mismatch vs reference"

    # bf16-weight / bf16-output MXU fast path (the performance configuration);
    # tolerance sized for bf16 operand + output rounding with f32 accumulation.
    prep_bf16 = prepare_params(params, compute_dtype=jnp.bfloat16)
    out_bf16 = jax.block_until_ready(
        mlp_factorized_forward(x, prep_bf16, num_classes=num_classes,
                               out_dtype=jnp.bfloat16))
    assert out_bf16.shape == (B, num_classes)
    assert jnp.allclose(out_bf16.astype(jnp.float32), ref,
                        atol=5e-2, rtol=5e-2), "bf16 mismatch vs reference"

    print("KERNEL_OK")
</pallas_src>

<mosaic_0001>
module attributes {stable_mosaic.version = 11 : i64} {
  func.func @_mlp_kernel(%arg0: i32, %arg1: memref<8x1024xf32, #tpu.memory_space<vmem>>, %arg2: memref<1024x128xf32, #tpu.memory_space<vmem>>, %arg3: memref<1x128xf32, #tpu.memory_space<vmem>>, %arg4: memref<128x128xf32, #tpu.memory_space<vmem>>, %arg5: memref<1x128xf32, #tpu.memory_space<vmem>>, %arg6: memref<128x128xf32, #tpu.memory_space<vmem>>, %arg7: memref<1x128xf32, #tpu.memory_space<vmem>>, %arg8: memref<128x128xf32, #tpu.memory_space<vmem>>, %arg9: memref<1x128xf32, #tpu.memory_space<vmem>>, %arg10: memref<8x128xf32, #tpu.memory_space<vmem>>) attributes {dimension_semantics = [#tpu.dimension_semantics<parallel>], iteration_bounds = array<i64: 1>, scalar_prefetch = 0 : i64, scratch_operands = 0 : i64, tpu.core_type = #tpu.core_type<tc>, window_params = [{transform_indices = @transform_0, window_bounds = array<i64: 8, 1024>}, {pipeline_mode = #tpu.pipeline_mode<synchronous>, transform_indices = @transform_1, window_bounds = array<i64: 1024, 128>}, {pipeline_mode = #tpu.pipeline_mode<synchronous>, transform_indices = @transform_2, window_bounds = array<i64: 1, 128>}, {pipeline_mode = #tpu.pipeline_mode<synchronous>, transform_indices = @transform_3, window_bounds = array<i64: 128, 128>}, {pipeline_mode = #tpu.pipeline_mode<synchronous>, transform_indices = @transform_4, window_bounds = array<i64: 1, 128>}, {pipeline_mode = #tpu.pipeline_mode<synchronous>, transform_indices = @transform_5, window_bounds = array<i64: 128, 128>}, {pipeline_mode = #tpu.pipeline_mode<synchronous>, transform_indices = @transform_6, window_bounds = array<i64: 1, 128>}, {pipeline_mode = #tpu.pipeline_mode<synchronous>, transform_indices = @transform_7, window_bounds = array<i64: 128, 128>}, {pipeline_mode = #tpu.pipeline_mode<synchronous>, transform_indices = @transform_8, window_bounds = array<i64: 1, 128>}, {transform_indices = @transform_9, window_bounds = array<i64: 8, 128>}]} {
    %c0 = arith.constant 0 : index
    %c0_0 = arith.constant 0 : index
    %0 = vector.load %arg1[%c0, %c0_0] : memref<8x1024xf32, #tpu.memory_space<vmem>>, vector<8x1024xf32>
    %c0_1 = arith.constant 0 : index
    %c0_2 = arith.constant 0 : index
    %1 = vector.load %arg2[%c0_1, %c0_2] : memref<1024x128xf32, #tpu.memory_space<vmem>>, vector<1024x128xf32>
    %cst = arith.constant dense<0.000000e+00> : vector<8x128xf32>
    %2 = tpu.matmul %0, %1, %cst {dimension_numbers = #tpu.dot_dimension_numbers<[1], [0], [0], [1], [0, 0, 1, 1], [], []>} : vector<8x1024xf32>, vector<1024x128xf32>, vector<8x128xf32> -> vector<8x128xf32>
    %c0_3 = arith.constant 0 : index
    %c0_4 = arith.constant 0 : index
    %3 = vector.load %arg3[%c0_3, %c0_4] : memref<1x128xf32, #tpu.memory_space<vmem>>, vector<1x128xf32>
    %4 = vector.broadcast %3 : vector<1x128xf32> to vector<8x128xf32>
    %5 = arith.addf %2, %4 : vector<8x128xf32>
    %cst_5 = arith.constant 0.000000e+00 : f32
    %6 = vector.broadcast %cst_5 : f32 to vector<8x128xf32>
    %7 = arith.maximumf %5, %6 : vector<8x128xf32>
    %c0_6 = arith.constant 0 : index
    %c0_7 = arith.constant 0 : index
    %8 = vector.load %arg4[%c0_6, %c0_7] : memref<128x128xf32, #tpu.memory_space<vmem>>, vector<128x128xf32>
    %cst_8 = arith.constant dense<0.000000e+00> : vector<8x128xf32>
    %9 = tpu.matmul %7, %8, %cst_8 {dimension_numbers = #tpu.dot_dimension_numbers<[1], [0], [0], [1], [0, 0, 1, 1], [], []>} : vector<8x128xf32>, vector<128x128xf32>, vector<8x128xf32> -> vector<8x128xf32>
    %c0_9 = arith.constant 0 : index
    %c0_10 = arith.constant 0 : index
    %10 = vector.load %arg5[%c0_9, %c0_10] : memref<1x128xf32, #tpu.memory_space<vmem>>, vector<1x128xf32>
    %11 = vector.broadcast %10 : vector<1x128xf32> to vector<8x128xf32>
    %12 = arith.addf %9, %11 : vector<8x128xf32>
    %cst_11 = arith.constant 0.000000e+00 : f32
    %13 = vector.broadcast %cst_11 : f32 to vector<8x128xf32>
    %14 = arith.maximumf %12, %13 : vector<8x128xf32>
    %c0_12 = arith.constant 0 : index
    %c0_13 = arith.constant 0 : index
    %15 = vector.load %arg6[%c0_12, %c0_13] : memref<128x128xf32, #tpu.memory_space<vmem>>, vector<128x128xf32>
    %cst_14 = arith.constant dense<0.000000e+00> : vector<8x128xf32>
    %16 = tpu.matmul %14, %15, %cst_14 {dimension_numbers = #tpu.dot_dimension_numbers<[1], [0], [0], [1], [0, 0, 1, 1], [], []>} : vector<8x128xf32>, vector<128x128xf32>, vector<8x128xf32> -> vector<8x128xf32>
    %c0_15 = arith.constant 0 : index
    %c0_16 = arith.constant 0 : index
    %17 = vector.load %arg7[%c0_15, %c0_16] : memref<1x128xf32, #tpu.memory_space<vmem>>, vector<1x128xf32>
    %18 = vector.broadcast %17 : vector<1x128xf32> to vector<8x128xf32>
    %19 = arith.addf %16, %18 : vector<8x128xf32>
    %cst_17 = arith.constant 0.000000e+00 : f32
    %20 = vector.broadcast %cst_17 : f32 to vector<8x128xf32>
    %21 = arith.maximumf %19, %20 : vector<8x128xf32>
    %c0_18 = arith.constant 0 : index
    %c0_19 = arith.constant 0 : index
    %22 = vector.load %arg8[%c0_18, %c0_19] : memref<128x128xf32, #tpu.memory_space<vmem>>, vector<128x128xf32>
    %cst_20 = arith.constant dense<0.000000e+00> : vector<8x128xf32>
    %23 = tpu.matmul %21, %22, %cst_20 {dimension_numbers = #tpu.dot_dimension_numbers<[1], [0], [0], [1], [0, 0, 1, 1], [], []>} : vector<8x128xf32>, vector<128x128xf32>, vector<8x128xf32> -> vector<8x128xf32>
    %c0_21 = arith.constant 0 : index
    %c0_22 = arith.constant 0 : index
    %24 = vector.load %arg9[%c0_21, %c0_22] : memref<1x128xf32, #tpu.memory_space<vmem>>, vector<1x128xf32>
    %25 = vector.broadcast %24 : vector<1x128xf32> to vector<8x128xf32>
    %26 = arith.addf %23, %25 : vector<8x128xf32>
    %c0_23 = arith.constant 0 : index
    %c0_24 = arith.constant 0 : index
    %27 = vector.load %arg10[%c0_23, %c0_24] : memref<8x128xf32, #tpu.memory_space<vmem>>, vector<8x128xf32>
    tpu.vector_store %arg10[%c0_23, %c0_24], %26 {strides = array<i32>} : memref<8x128xf32, #tpu.memory_space<vmem>>, vector<8x128xf32>,
    return
  }
  func.func @transform_0(%arg0: i32) -> (i32, i32) {
    %c0_i32 = arith.constant 0 : i32
    %c0_i32_0 = arith.constant 0 : i32
    return %arg0, %c0_i32 : i32, i32
  }
  func.func @transform_1(%arg0: i32) -> (i32, i32) {
    %c0_i32 = arith.constant 0 : i32
    %c0_i32_0 = arith.constant 0 : i32
    %c0_i32_1 = arith.constant 0 : i32
    return %c0_i32, %c0_i32_0 : i32, i32
  }
  func.func @transform_2(%arg0: i32) -> (i32, i32) {
    %c0_i32 = arith.constant 0 : i32
    %c0_i32_0 = arith.constant 0 : i32
    %c0_i32_1 = arith.constant 0 : i32
    return %c0_i32, %c0_i32_0 : i32, i32
  }
  func.func @transform_3(%arg0: i32) -> (i32, i32) {
    %c0_i32 = arith.constant 0 : i32
    %c0_i32_0 = arith.constant 0 : i32
    %c0_i32_1 = arith.constant 0 : i32
    return %c0_i32, %c0_i32_0 : i32, i32
  }
  func.func @transform_4(%arg0: i32) -> (i32, i32) {
    %c0_i32 = arith.constant 0 : i32
    %c0_i32_0 = arith.constant 0 : i32
    %c0_i32_1 = arith.constant 0 : i32
    return %c0_i32, %c0_i32_0 : i32, i32
  }
  func.func @transform_5(%arg0: i32) -> (i32, i32) {
    %c0_i32 = arith.constant 0 : i32
    %c0_i32_0 = arith.constant 0 : i32
    %c0_i32_1 = arith.constant 0 : i32
    return %c0_i32, %c0_i32_0 : i32, i32
  }
  func.func @transform_6(%arg0: i32) -> (i32, i32) {
    %c0_i32 = arith.constant 0 : i32
    %c0_i32_0 = arith.constant 0 : i32
    %c0_i32_1 = arith.constant 0 : i32
    return %c0_i32, %c0_i32_0 : i32, i32
  }
  func.func @transform_7(%arg0: i32) -> (i32, i32) {
    %c0_i32 = arith.constant 0 : i32
    %c0_i32_0 = arith.constant 0 : i32
    %c0_i32_1 = arith.constant 0 : i32
    return %c0_i32, %c0_i32_0 : i32, i32
  }
  func.func @transform_8(%arg0: i32) -> (i32, i32) {
    %c0_i32 = arith.constant 0 : i32
    %c0_i32_0 = arith.constant 0 : i32
    %c0_i32_1 = arith.constant 0 : i32
    return %c0_i32, %c0_i32_0 : i32, i32
  }
  func.func @transform_9(%arg0: i32) -> (i32, i32) {
    %c0_i32 = arith.constant 0 : i32
    %c0_i32_0 = arith.constant 0 : i32
    return %arg0, %c0_i32 : i32, i32
  }
}

</mosaic_0001>

<llo_original>
// kernel: mlp_factorized_forward.1
$region0: #{mlp_factorized_forward.1}
  #allocation0 [shape = 'u32[]', space=smem, size = 0x4, offset = 0x4, fixed_abs, tag = 'smem constant byte address 0x4 - core index']
  #allocation1 [shape = 'u32[144,128]{1,0:T(1,128)}', space=vmem, size = 0x12000, scoped, tag = 'internal scratch']
  %s0 = inlined_call_operand.vmem [shape: f32[8,1024], index: 0, kind: input, shape index: {}]
  %s1 = inlined_call_operand.hbm [shape: f32[1024,128], index: 1, kind: input, shape index: {}]
  %s2 = inlined_call_operand.vmem [shape: f32[1,128], index: 2, kind: input, shape index: {}]
  %s3 = inlined_call_operand.vmem [shape: f32[128,128], index: 3, kind: input, shape index: {}]
  %s4 = inlined_call_operand.vmem [shape: f32[1,128], index: 4, kind: input, shape index: {}]
  %s5 = inlined_call_operand.hbm [shape: f32[128,128], index: 5, kind: input, shape index: {}]
  %s6 = inlined_call_operand.vmem [shape: f32[1,128], index: 6, kind: input, shape index: {}]
  %s7 = inlined_call_operand.hbm [shape: f32[128,128], index: 7, kind: input, shape index: {}]
  %s8 = inlined_call_operand.vmem [shape: f32[1,128], index: 8, kind: input, shape index: {}]
  %s9 = inlined_call_operand.vmem [shape: f32[8,128], index: 9, kind: output, shape index: {}]
  %s10 = sld [smem:[#allocation0]]
  $region58: #{mlp_factorized_forward.1} parent=0
    _
  %s12 = ssub.s32 1, %s10
  %s13 = scalar_select 0, %s12, %s10
  $region1: #{mlp_factorized_forward.1} parent=0
    #allocation2 [shape = 'u8[524288]{0}', space=vmem, size = 0x80000, scoped, tag = 'input window, operand 1, single buffered']
    #allocation3 [shape = 's32[1]{0}', space=sflag, size = 0x4, scoped, tag = 'scoped memory for mlp_factorized_forward.1']
    #allocation4 [shape = 'u8[65536]{0}', space=vmem, size = 0x10000, scoped, tag = 'input window, operand 5, single buffered']
    #allocation5 [shape = 's32[1]{0}', space=sflag, size = 0x4, scoped, tag = 'scoped memory for mlp_factorized_forward.1']
    #allocation6 [shape = 'u8[65536]{0}', space=vmem, size = 0x10000, scoped, tag = 'input window, operand 7, single buffered']
    %14 = vsyncpa [#allocation3], 0
    %15 = vsyncpa [#allocation5], 0
    // Predicated region
    $region2: #{mlp_factorized_forward.1} parent=1 // pred_check
      _
    $region3: #{mlp_factorized_forward.1} parent=1 // pred_check_branch
      %17 = sbr.rel (0) target = $region5
    $region4: #{mlp_factorized_forward.1} parent=1 // pred_region
      _
    $region5: #{mlp_factorized_forward.1} parent=1 // pred_fallthru
      _
    // Predicated region
    $region6: #{mlp_factorized_forward.1} parent=1 // pred_check
      _
    $region7: #{mlp_factorized_forward.1} parent=1 // pred_check_branch
      %19 = sbr.rel (0) target = $region9
    $region8: #{mlp_factorized_forward.1} parent=1 // pred_region
      %s21 = ssub.s32 16384, 16384
      %22 = vsyncadd [#allocation3], %s21
      %s23 = sshll.u32 [#allocation2], 4
      %s24 = int_to_ptr.vmem [resolvable:$true] %s23
      %29 = dma.hbm_to_vmem [thread:$0]  %s1, 16384, %s24, [#allocation3], 128, 128, 8
    $region9: #{mlp_factorized_forward.1} parent=1 // pred_fallthru
      _
    // Predicated region
    $region10: #{mlp_factorized_forward.1} parent=1 // pred_check
      _
    $region11: #{mlp_factorized_forward.1} parent=1 // pred_check_branch
      %31 = sbr.rel (0) target = $region13
    $region12: #{mlp_factorized_forward.1} parent=1 // pred_region
      _
    $region13: #{mlp_factorized_forward.1} parent=1 // pred_fallthru
      _
    // Predicated region
    $region14: #{mlp_factorized_forward.1} parent=1 // pred_check
      _
    $region15: #{mlp_factorized_forward.1} parent=1 // pred_check_branch
      %33 = sbr.rel (0) target = $region17
    $region16: #{mlp_factorized_forward.1} parent=1 // pred_region
      _
    $region17: #{mlp_factorized_forward.1} parent=1 // pred_fallthru
      _
    // Predicated region
    $region18: #{mlp_factorized_forward.1} parent=1 // pred_check
      _
    $region19: #{mlp_factorized_forward.1} parent=1 // pred_check_branch
      %35 = sbr.rel (0) target = $region21
    $region20: #{mlp_factorized_forward.1} parent=1 // pred_region
      _
    $region21: #{mlp_factorized_forward.1} parent=1 // pred_fallthru
      _
    // Predicated region
    $region22: #{mlp_factorized_forward.1} parent=1 // pred_check
      _
    $region23: #{mlp_factorized_forward.1} parent=1 // pred_check_branch
      %37 = sbr.rel (0) target = $region25
    $region24: #{mlp_factorized_forward.1} parent=1 // pred_region
      %s39 = ssub.s32 2048, 2048
      %40 = vsyncadd [#allocation5], %s39
      %s41 = sshll.u32 [#allocation4], 4
      %s42 = int_to_ptr.vmem [resolvable:$true] %s41
      %47 = dma.hbm_to_vmem [thread:$0]  %s5, 2048, %s42, [#allocation5], 128, 128, 8
    $region25: #{mlp_factorized_forward.1} parent=1 // pred_fallthru
      _
    // Predicated region
    $region26: #{mlp_factorized_forward.1} parent=1 // pred_check
      _
    $region27: #{mlp_factorized_forward.1} parent=1 // pred_check_branch
      %49 = sbr.rel (0) target = $region29
    $region28: #{mlp_factorized_forward.1} parent=1 // pred_region
      _
    $region29: #{mlp_factorized_forward.1} parent=1 // pred_fallthru
      _
    // Predicated region
    $region30: #{mlp_factorized_forward.1} parent=1 // pred_check
      _
    $region31: #{mlp_factorized_forward.1} parent=1 // pred_check_branch
      %51 = sbr.rel (0) target = $region33
    $region32: #{mlp_factorized_forward.1} parent=1 // pred_region
      %s53 = ssub.s32 2048, 2048
      %54 = vsyncadd [#allocation5], %s53
      %s55 = sshll.u32 [#allocation6], 4
      %s56 = int_to_ptr.vmem [resolvable:$true] %s55
      %61 = dma.hbm_to_vmem [thread:$0]  %s7, 2048, %s56, [#allocation5], 128, 128, 8
    $region33: #{mlp_factorized_forward.1} parent=1 // pred_fallthru
      _
    // Predicated region
    $region34: #{mlp_factorized_forward.1} parent=1 // pred_check
      _
    $region35: #{mlp_factorized_forward.1} parent=1 // pred_check_branch
      %63 = sbr.rel (0) target = $region37
    $region36: #{mlp_factorized_forward.1} parent=1 // pred_region
      _
    $region37: #{mlp_factorized_forward.1} parent=1 // pred_fallthru
      _
    // Predicated region
    $region38: #{mlp_factorized_forward.1} parent=1 // pred_check
      _
    $region39: #{mlp_factorized_forward.1} parent=1 // pred_check_branch
      %65 = sbr.rel (0) target = $region41
    $region40: #{mlp_factorized_forward.1} parent=1 // pred_region
      %66 = dma.done [#allocation3], 16384
    $region41: #{mlp_factorized_forward.1} parent=1 // pred_fallthru
      _
    // Predicated region
    $region42: #{mlp_factorized_forward.1} parent=1 // pred_check
      _
    $region43: #{mlp_factorized_forward.1} parent=1 // pred_check_branch
      %68 = sbr.rel (0) target = $region45
    $region44: #{mlp_factorized_forward.1} parent=1 // pred_region
      %69 = dma.done [#allocation5], 2048
    $region45: #{mlp_factorized_forward.1} parent=1 // pred_fallthru
      _
    // Predicated region
    $region46: #{mlp_factorized_forward.1} parent=1 // pred_check
      _
    $region47: #{mlp_factorized_forward.1} parent=1 // pred_check_branch
      %71 = sbr.rel (0) target = $region49
    $region48: #{mlp_factorized_forward.1} parent=1 // pred_region
      %72 = dma.done [#allocation5], 2048
    $region49: #{mlp_factorized_forward.1} parent=1 // pred_fallthru
      _
    %v73 = vld [vmem:[%s0] sm:$0xff]
    %v74 = vld [vmem:[%s0 + $0x8] sm:$0xff]
    %v75 = vld [vmem:[%s0 + $0x10] sm:$0xff]
    %v76 = vld [vmem:[%s0 + $0x18] sm:$0xff]
    %v77 = vld [vmem:[%s0 + $0x20] sm:$0xff]
    %v78 = vld [vmem:[%s0 + $0x28] sm:$0xff]
    %v79 = vld [vmem:[%s0 + $0x30] sm:$0xff]
    %v80 = vld [vmem:[%s0 + $0x38] sm:$0xff]
    %v81 = vld [vmem:[#allocation2] sm:$0xff]
    %v82 = vld [vmem:[#allocation2 + $0x8] sm:$0xff]
    %v83 = vld [vmem:[#allocation2 + $0x10] sm:$0xff]
    %v84 = vld [vmem:[#allocation2 + $0x18] sm:$0xff]
    %v85 = vld [vmem:[#allocation2 + $0x20] sm:$0xff]
    %v86 = vld [vmem:[#allocation2 + $0x28] sm:$0xff]
    %v87 = vld [vmem:[#allocation2 + $0x30] sm:$0xff]
    %v88 = vld [vmem:[#allocation2 + $0x38] sm:$0xff]
    %v89 = vld [vmem:[#allocation2 + $0x40] sm:$0xff]
    %v90 = vld [vmem:[#allocation2 + $0x48] sm:$0xff]
    %v91 = vld [vmem:[#allocation2 + $0x50] sm:$0xff]
    %v92 = vld [vmem:[#allocation2 + $0x58] sm:$0xff]
    %v93 = vld [vmem:[#allocation2 + $0x60] sm:$0xff]
    %v94 = vld [vmem:[#allocation2 + $0x68] sm:$0xff]
    %v95 = vld [vmem:[#allocation2 + $0x70] sm:$0xff]
    %v96 = vld [vmem:[#allocation2 + $0x78] sm:$0xff]
    %v97 = vld [vmem:[#allocation2 + $0x80] sm:$0xff]
    %v98 = vld [vmem:[#allocation2 + $0x88] sm:$0xff]
    %v99 = vld [vmem:[#allocation2 + $0x90] sm:$0xff]
    %v100 = vld [vmem:[#allocation2 + $0x98] sm:$0xff]
    %v101 = vld [vmem:[#allocation2 + $0xa0] sm:$0xff]
    %v102 = vld [vmem:[#allocation2 + $0xa8] sm:$0xff]
    %v103 = vld [vmem:[#allocation2 + $0xb0] sm:$0xff]
    %v104 = vld [vmem:[#allocation2 + $0xb8] sm:$0xff]
    %v105 = vld [vmem:[#allocation2 + $0xc0] sm:$0xff]
    %v106 = vld [vmem:[#allocation2 + $0xc8] sm:$0xff]
    %v107 = vld [vmem:[#allocation2 + $0xd0] sm:$0xff]
    %v108 = vld [vmem:[#allocation2 + $0xd8] sm:$0xff]
    %v109 = vld [vmem:[#allocation2 + $0xe0] sm:$0xff]
    %v110 = vld [vmem:[#allocation2 + $0xe8] sm:$0xff]
    %v111 = vld [vmem:[#allocation2 + $0xf0] sm:$0xff]
    %v112 = vld [vmem:[#allocation2 + $0xf8] sm:$0xff]
    %v113 = vld [vmem:[#allocation2 + $0x100] sm:$0xff]
    %v114 = vld [vmem:[#allocation2 + $0x108] sm:$0xff]
    %v115 = vld [vmem:[#allocation2 + $0x110] sm:$0xff]
    %v116 = vld [vmem:[#allocation2 + $0x118] sm:$0xff]
    %v117 = vld [vmem:[#allocation2 + $0x120] sm:$0xff]
    %v118 = vld [vmem:[#allocation2 + $0x128] sm:$0xff]
    %v119 = vld [vmem:[#allocation2 + $0x130] sm:$0xff]
    %v120 = vld [vmem:[#allocation2 + $0x138] sm:$0xff]
    %v121 = vld [vmem:[#allocation2 + $0x140] sm:$0xff]
    %v122 = vld [vmem:[#allocation2 + $0x148] sm:$0xff]
    %v123 = vld [vmem:[#allocation2 + $0x150] sm:$0xff]
    %v124 = vld [vmem:[#allocation2 + $0x158] sm:$0xff]
    %v125 = vld [vmem:[#allocation2 + $0x160] sm:$0xff]
    %v126 = vld [vmem:[#allocation2 + $0x168] sm:$0xff]
    %v127 = vld [vmem:[#allocation2 + $0x170] sm:$0xff]
    %v128 = vld [vmem:[#allocation2 + $0x178] sm:$0xff]
    %v129 = vld [vmem:[#allocation2 + $0x180] sm:$0xff]
    %v130 = vld [vmem:[#allocation2 + $0x188] sm:$0xff]
    %v131 = vld [vmem:[#allocation2 + $0x190] sm:$0xff]
    %v132 = vld [vmem:[#allocation2 + $0x198] sm:$0xff]
    %v133 = vld [vmem:[#allocation2 + $0x1a0] sm:$0xff]
    %v134 = vld [vmem:[#allocation2 + $0x1a8] sm:$0xff]
    %v135 = vld [vmem:[#allocation2 + $0x1b0] sm:$0xff]
    %v136 = vld [vmem:[#allocation2 + $0x1b8] sm:$0xff]
    %v137 = vld [vmem:[#allocation2 + $0x1c0] sm:$0xff]
    %v138 = vld [vmem:[#allocation2 + $0x1c8] sm:$0xff]
    %v139 = vld [vmem:[#allocation2 + $0x1d0] sm:$0xff]
    %v140 = vld [vmem:[#allocation2 + $0x1d8] sm:$0xff]
    %v141 = vld [vmem:[#allocation2 + $0x1e0] sm:$0xff]
    %v142 = vld [vmem:[#allocation2 + $0x1e8] sm:$0xff]
    %v143 = vld [vmem:[#allocation2 + $0x1f0] sm:$0xff]
    %v144 = vld [vmem:[#allocation2 + $0x1f8] sm:$0xff]
    %v145 = vld [vmem:[#allocation2 + $0x200] sm:$0xff]
    %v146 = vld [vmem:[#allocation2 + $0x208] sm:$0xff]
    %v147 = vld [vmem:[#allocation2 + $0x210] sm:$0xff]
    %v148 = vld [vmem:[#allocation2 + $0x218] sm:$0xff]
    %v149 = vld [vmem:[#allocation2 + $0x220] sm:$0xff]
    %v150 = vld [vmem:[#allocation2 + $0x228] sm:$0xff]
    %v151 = vld [vmem:[#allocation2 + $0x230] sm:$0xff]
    %v152 = vld [vmem:[#allocation2 + $0x238] sm:$0xff]
    %v153 = vld [vmem:[#allocation2 + $0x240] sm:$0xff]
    %v154 = vld [vmem:[#allocation2 + $0x248] sm:$0xff]
    %v155 = vld [vmem:[#allocation2 + $0x250] sm:$0xff]
    %v156 = vld [vmem:[#allocation2 + $0x258] sm:$0xff]
    %v157 = vld [vmem:[#allocation2 + $0x260] sm:$0xff]
    %v158 = vld [vmem:[#allocation2 + $0x268] sm:$0xff]
    %v159 = vld [vmem:[#allocation2 + $0x270] sm:$0xff]
    %v160 = vld [vmem:[#allocation2 + $0x278] sm:$0xff]
    %v161 = vld [vmem:[#allocation2 + $0x280] sm:$0xff]
    %v162 = vld [vmem:[#allocation2 + $0x288] sm:$0xff]
    %v163 = vld [vmem:[#allocation2 + $0x290] sm:$0xff]
    %v164 = vld [vmem:[#allocation2 + $0x298] sm:$0xff]
    %v165 = vld [vmem:[#allocation2 + $0x2a0] sm:$0xff]
    %v166 = vld [vmem:[#allocation2 + $0x2a8] sm:$0xff]
    %v167 = vld [vmem:[#allocation2 + $0x2b0] sm:$0xff]
    %v168 = vld [vmem:[#allocation2 + $0x2b8] sm:$0xff]
    %v169 = vld [vmem:[#allocation2 + $0x2c0] sm:$0xff]
    %v170 = vld [vmem:[#allocation2 + $0x2c8] sm:$0xff]
    %v171 = vld [vmem:[#allocation2 + $0x2d0] sm:$0xff]
    %v172 = vld [vmem:[#allocation2 + $0x2d8] sm:$0xff]
    %v173 = vld [vmem:[#allocation2 + $0x2e0] sm:$0xff]
    %v174 = vld [vmem:[#allocation2 + $0x2e8] sm:$0xff]
    %v175 = vld [vmem:[#allocation2 + $0x2f0] sm:$0xff]
    %v176 = vld [vmem:[#allocation2 + $0x2f8] sm:$0xff]
    %v177 = vld [vmem:[#allocation2 + $0x300] sm:$0xff]
    %v178 = vld [vmem:[#allocation2 + $0x308] sm:$0xff]
    %v179 = vld [vmem:[#allocation2 + $0x310] sm:$0xff]
    %v180 = vld [vmem:[#allocation2 + $0x318] sm:$0xff]
    %v181 = vld [vmem:[#allocation2 + $0x320] sm:$0xff]
    %v182 = vld [vmem:[#allocation2 + $0x328] sm:$0xff]
    %v183 = vld [vmem:[#allocation2 + $0x330] sm:$0xff]
    %v184 = vld [vmem:[#allocation2 + $0x338] sm:$0xff]
    %v185 = vld [vmem:[#allocation2 + $0x340] sm:$0xff]
    %v186 = vld [vmem:[#allocation2 + $0x348] sm:$0xff]
    %v187 = vld [vmem:[#allocation2 + $0x350] sm:$0xff]
    %v188 = vld [vmem:[#allocation2 + $0x358] sm:$0xff]
    %v189 = vld [vmem:[#allocation2 + $0x360] sm:$0xff]
    %v190 = vld [vmem:[#allocation2 + $0x368] sm:$0xff]
    %v191 = vld [vmem:[#allocation2 + $0x370] sm:$0xff]
    %v192 = vld [vmem:[#allocation2 + $0x378] sm:$0xff]
    %v193 = vld [vmem:[#allocation2 + $0x380] sm:$0xff]
    %v194 = vld [vmem:[#allocation2 + $0x388] sm:$0xff]
    %v195 = vld [vmem:[#allocation2 + $0x390] sm:$0xff]
    %v196 = vld [vmem:[#allocation2 + $0x398] sm:$0xff]
    %v197 = vld [vmem:[#allocation2 + $0x3a0] sm:$0xff]
    %v198 = vld [vmem:[#allocation2 + $0x3a8] sm:$0xff]
    %v199 = vld [vmem:[#allocation2 + $0x3b0] sm:$0xff]
    %v200 = vld [vmem:[#allocation2 + $0x3b8] sm:$0xff]
    %v201 = vld [vmem:[#allocation2 + $0x3c0] sm:$0xff]
    %v202 = vld [vmem:[#allocation2 + $0x3c8] sm:$0xff]
    %v203 = vld [vmem:[#allocation2 + $0x3d0] sm:$0xff]
    %v204 = vld [vmem:[#allocation2 + $0x3d8] sm:$0xff]
    %v205 = vld [vmem:[#allocation2 + $0x3e0] sm:$0xff]
    %v206 = vld [vmem:[#allocation2 + $0x3e8] sm:$0xff]
    %v207 = vld [vmem:[#allocation2 + $0x3f0] sm:$0xff]
    %v208 = vld [vmem:[#allocation2 + $0x3f8] sm:$0xff]
    %v209 = vld [vmem:[%s2] sm:$0x1]
    %v211 = vlaneseq
    %v212 = vshrl.u32 %v211, 7
    %v213 = vsub.s32 0, %v212
    %v214 = vrot.slane %v209, %v213
    %216 = vmatprep.subr.mxu0 0.0
    %217 = vmatpush1.msra.mxu0 %v96
    %218 = vmatprep.subr.mxu0 0.0
    %219 = vmatpush1.msra.mxu0 %v95
    %220 = vmatprep.subr.mxu0 0.0
    %221 = vmatpush1.msra.mxu0 %v94
    %222 = vmatprep.subr.mxu0 0.0
    %223 = vmatpush1.msra.mxu0 %v93
    %224 = vmatprep.subr.mxu0 0.0
    %225 = vmatpush1.msra.mxu0 %v92
    %226 = vmatprep.subr.mxu0 0.0
    %227 = vmatpush1.msra.mxu0 %v91
    %228 = vmatprep.subr.mxu0 0.0
    %229 = vmatpush1.msra.mxu0 %v90
    %230 = vmatprep.subr.mxu0 0.0
    %231 = vmatpush1.msra.mxu0 %v89
    %232 = vmatprep.subr.mxu0 0.0
    %233 = vmatpush1.msra.mxu0 %v88
    %234 = vmatprep.subr.mxu0 0.0
    %235 = vmatpush1.msra.mxu0 %v87
    %236 = vmatprep.subr.mxu0 0.0
    %237 = vmatpush1.msra.mxu0 %v86
    %238 = vmatprep.subr.mxu0 0.0
    %239 = vmatpush1.msra.mxu0 %v85
    %240 = vmatprep.subr.mxu0 0.0
    %241 = vmatpush1.msra.mxu0 %v84
    %242 = vmatprep.subr.mxu0 0.0
    %243 = vmatpush1.msra.mxu0 %v83
    %244 = vmatprep.subr.mxu0 0.0
    %245 = vmatpush1.msra.mxu0 %v82
    %246 = vmatprep.subr.mxu0 0.0
    %247 = vmatpush1.msra.mxu0 %v81
    %248 = vmatprep.subr.mxu0 0.0
    %249 = vmatpush2.msra.mxu0 %v112
    %250 = vmatprep.subr.mxu0 0.0
    %251 = vmatpush2.msra.mxu0 %v111
    %252 = vmatprep.subr.mxu0 0.0
    %253 = vmatpush2.msra.mxu0 %v110
    %254 = vmatprep.subr.mxu0 0.0
    %255 = vmatpush2.msra.mxu0 %v109
    %256 = vmatprep.subr.mxu0 0.0
    %257 = vmatpush2.msra.mxu0 %v108
    %258 = vmatprep.subr.mxu0 0.0
    %259 = vmatpush2.msra.mxu0 %v107
    %260 = vmatprep.subr.mxu0 0.0
    %261 = vmatpush2.msra.mxu0 %v106
    %262 = vmatprep.subr.mxu0 0.0
    %263 = vmatpush2.msra.mxu0 %v105
    %264 = vmatprep.subr.mxu0 0.0
    %265 = vmatpush2.msra.mxu0 %v104
    %266 = vmatprep.subr.mxu0 0.0
    %267 = vmatpush2.msra.mxu0 %v103
    %268 = vmatprep.subr.mxu0 0.0
    %269 = vmatpush2.msra.mxu0 %v102
    %270 = vmatprep.subr.mxu0 0.0
    %271 = vmatpush2.msra.mxu0 %v101
    %272 = vmatprep.subr.mxu0 0.0
    %273 = vmatpush2.msra.mxu0 %v100
    %274 = vmatprep.subr.mxu0 0.0
    %275 = vmatpush2.msra.mxu0 %v99
    %276 = vmatprep.subr.mxu0 0.0
    %277 = vmatpush2.msra.mxu0 %v98
    %278 = vmatprep.subr.mxu0 0.0
    %279 = vmatpush2.msra.mxu0 %v97
    %280 = vmatprep.mubr.f32.mxu0 %v74
    %281 = vmatmul.mubr.f32.gmra.mxu0 %v73
    %v282 = vpop.f32.mrf.mxu0
    %v283 = vadd.f32 %v214, %v282
    %v284 = vpop.f32.mrf.mxu0
    %285 = vdwg.mxu0
    %286 = vmatprep.subr.mxu0 0.0
    %287 = vmatpush1.msra.mxu0 %v128
    %288 = vmatprep.subr.mxu0 0.0
    %289 = vmatpush1.msra.mxu0 %v127
    %290 = vmatprep.subr.mxu0 0.0
    %291 = vmatpush1.msra.mxu0 %v126
    %292 = vmatprep.subr.mxu0 0.0
    %293 = vmatpush1.msra.mxu0 %v125
    %294 = vmatprep.subr.mxu0 0.0
    %295 = vmatpush1.msra.mxu0 %v124
    %296 = vmatprep.subr.mxu0 0.0
    %297 = vmatpush1.msra.mxu0 %v123
    %298 = vmatprep.subr.mxu0 0.0
    %299 = vmatpush1.msra.mxu0 %v122
    %300 = vmatprep.subr.mxu0 0.0
    %301 = vmatpush1.msra.mxu0 %v121
    %302 = vmatprep.subr.mxu0 0.0
    %303 = vmatpush1.msra.mxu0 %v120
    %304 = vmatprep.subr.mxu0 0.0
    %305 = vmatpush1.msra.mxu0 %v119
    %306 = vmatprep.subr.mxu0 0.0
    %307 = vmatpush1.msra.mxu0 %v118
    %308 = vmatprep.subr.mxu0 0.0
    %309 = vmatpush1.msra.mxu0 %v117
    %310 = vmatprep.subr.mxu0 0.0
    %311 = vmatpush1.msra.mxu0 %v116
    %312 = vmatprep.subr.mxu0 0.0
    %313 = vmatpush1.msra.mxu0 %v115
    %314 = vmatprep.subr.mxu0 0.0
    %315 = vmatpush1.msra.mxu0 %v114
    %316 = vmatprep.subr.mxu0 0.0
    %317 = vmatpush1.msra.mxu0 %v113
    %318 = vmatprep.subr.mxu0 0.0
    %319 = vmatpush2.msra.mxu0 %v144
    %320 = vmatprep.subr.mxu0 0.0
    %321 = vmatpush2.msra.mxu0 %v143
    %322 = vmatprep.subr.mxu0 0.0
    %323 = vmatpush2.msra.mxu0 %v142
    %324 = vmatprep.subr.mxu0 0.0
    %325 = vmatpush2.msra.mxu0 %v141
    %326 = vmatprep.subr.mxu0 0.0
    %327 = vmatpush2.msra.mxu0 %v140
    %328 = vmatprep.subr.mxu0 0.0
    %329 = vmatpush2.msra.mxu0 %v139
    %330 = vmatprep.subr.mxu0 0.0
    %331 = vmatpush2.msra.mxu0 %v138
    %332 = vmatprep.subr.mxu0 0.0
    %333 = vmatpush2.msra.mxu0 %v137
    %334 = vmatprep.subr.mxu0 0.0
    %335 = vmatpush2.msra.mxu0 %v136
    %336 = vmatprep.subr.mxu0 0.0
    %337 = vmatpush2.msra.mxu0 %v135
    %338 = vmatprep.subr.mxu0 0.0
    %339 = vmatpush2.msra.mxu0 %v134
    %340 = vmatprep.subr.mxu0 0.0
    %341 = vmatpush2.msra.mxu0 %v133
    %342 = vmatprep.subr.mxu0 0.0
    %343 = vmatpush2.msra.mxu0 %v132
    %344 = vmatprep.subr.mxu0 0.0
    %345 = vmatpush2.msra.mxu0 %v131
    %346 = vmatprep.subr.mxu0 0.0
    %347 = vmatpush2.msra.mxu0 %v130
    %348 = vmatprep.subr.mxu0 0.0
    %349 = vmatpush2.msra.mxu0 %v129
    %350 = vmatprep.mubr.f32.mxu0 %v76
    %351 = vmatmul.mubr.f32.gmra.mxu0 %v75
    %v352 = vpop.f32.mrf.mxu0
    %v353 = vadd.f32 %v283, %v352
    %v354 = vpop.f32.mrf.mxu0
    %355 = vdwg.mxu0
    %356 = vmatprep.subr.mxu0 0.0
    %357 = vmatpush1.msra.mxu0 %v160
    %358 = vmatprep.subr.mxu0 0.0
    %359 = vmatpush1.msra.mxu0 %v159
    %360 = vmatprep.subr.mxu0 0.0
    %361 = vmatpush1.msra.mxu0 %v158
    %362 = vmatprep.subr.mxu0 0.0
    %363 = vmatpush1.msra.mxu0 %v157
    %364 = vmatprep.subr.mxu0 0.0
    %365 = vmatpush1.msra.mxu0 %v156
    %366 = vmatprep.subr.mxu0 0.0
    %367 = vmatpush1.msra.mxu0 %v155
    %368 = vmatprep.subr.mxu0 0.0
    %369 = vmatpush1.msra.mxu0 %v154
    %370 = vmatprep.subr.mxu0 0.0
    %371 = vmatpush1.msra.mxu0 %v153
    %372 = vmatprep.subr.mxu0 0.0
    %373 = vmatpush1.msra.mxu0 %v152
    %374 = vmatprep.subr.mxu0 0.0
    %375 = vmatpush1.msra.mxu0 %v151
    %376 = vmatprep.subr.mxu0 0.0
    %377 = vmatpush1.msra.mxu0 %v150
    %378 = vmatprep.subr.mxu0 0.0
    %379 = vmatpush1.msra.mxu0 %v149
    %380 = vmatprep.subr.mxu0 0.0
    %381 = vmatpush1.msra.mxu0 %v148
    %382 = vmatprep.subr.mxu0 0.0
    %383 = vmatpush1.msra.mxu0 %v147
    %384 = vmatprep.subr.mxu0 0.0
    %385 = vmatpush1.msra.mxu0 %v146
    %386 = vmatprep.subr.mxu0 0.0
    %387 = vmatpush1.msra.mxu0 %v145
    %388 = vmatprep.subr.mxu0 0.0
    %389 = vmatpush2.msra.mxu0 %v176
    %390 = vmatprep.subr.mxu0 0.0
    %391 = vmatpush2.msra.mxu0 %v175
    %392 = vmatprep.subr.mxu0 0.0
    %393 = vmatpush2.msra.mxu0 %v174
    %394 = vmatprep.subr.mxu0 0.0
    %395 = vmatpush2.msra.mxu0 %v173
    %396 = vmatprep.subr.mxu0 0.0
    %397 = vmatpush2.msra.mxu0 %v172
    %398 = vmatprep.subr.mxu0 0.0
    %399 = vmatpush2.msra.mxu0 %v171
    %400 = vmatprep.subr.mxu0 0.0
    %401 = vmatpush2.msra.mxu0 %v170
    %402 = vmatprep.subr.mxu0 0.0
    %403 = vmatpush2.msra.mxu0 %v169
    %404 = vmatprep.subr.mxu0 0.0
    %405 = vmatpush2.msra.mxu0 %v168
    %406 = vmatprep.subr.mxu0 0.0
    %407 = vmatpush2.msra.mxu0 %v167
    %408 = vmatprep.subr.mxu0 0.0
    %409 = vmatpush2.msra.mxu0 %v166
    %410 = vmatprep.subr.mxu0 0.0
    %411 = vmatpush2.msra.mxu0 %v165
    %412 = vmatprep.subr.mxu0 0.0
    %413 = vmatpush2.msra.mxu0 %v164
    %414 = vmatprep.subr.mxu0 0.0
    %415 = vmatpush2.msra.mxu0 %v163
    %416 = vmatprep.subr.mxu0 0.0
    %417 = vmatpush2.msra.mxu0 %v162
    %418 = vmatprep.subr.mxu0 0.0
    %419 = vmatpush2.msra.mxu0 %v161
    %420 = vmatprep.mubr.f32.mxu0 %v78
    %421 = vmatmul.mubr.f32.gmra.mxu0 %v77
    %v422 = vpop.f32.mrf.mxu0
    %v423 = vadd.f32 %v353, %v422
    %v424 = vpop.f32.mrf.mxu0
    %425 = vdwg.mxu0
    %426 = vmatprep.subr.mxu0 0.0
    %427 = vmatpush1.msra.mxu0 %v192
    %428 = vmatprep.subr.mxu0 0.0
    %429 = vmatpush1.msra.mxu0 %v191
    %430 = vmatprep.subr.mxu0 0.0
    %431 = vmatpush1.msra.mxu0 %v190
    %432 = vmatprep.subr.mxu0 0.0
    %433 = vmatpush1.msra.mxu0 %v189
    %434 = vmatprep.subr.mxu0 0.0
    %435 = vmatpush1.msra.mxu0 %v188
    %436 = vmatprep.subr.mxu0 0.0
    %437 = vmatpush1.msra.mxu0 %v187
    %438 = vmatprep.subr.mxu0 0.0
    %439 = vmatpush1.msra.mxu0 %v186
    %440 = vmatprep.subr.mxu0 0.0
    %441 = vmatpush1.msra.mxu0 %v185
    %442 = vmatprep.subr.mxu0 0.0
    %443 = vmatpush1.msra.mxu0 %v184
    %444 = vmatprep.subr.mxu0 0.0
    %445 = vmatpush1.msra.mxu0 %v183
    %446 = vmatprep.subr.mxu0 0.0
    %447 = vmatpush1.msra.mxu0 %v182
    %448 = vmatprep.subr.mxu0 0.0
    %449 = vmatpush1.msra.mxu0 %v181
    %450 = vmatprep.subr.mxu0 0.0
    %451 = vmatpush1.msra.mxu0 %v180
    %452 = vmatprep.subr.mxu0 0.0
    %453 = vmatpush1.msra.mxu0 %v179
    %454 = vmatprep.subr.mxu0 0.0
    %455 = vmatpush1.msra.mxu0 %v178
    %456 = vmatprep.subr.mxu0 0.0
    %457 = vmatpush1.msra.mxu0 %v177
    %458 = vmatprep.subr.mxu0 0.0
    %459 = vmatpush2.msra.mxu0 %v208
    %460 = vmatprep.subr.mxu0 0.0
    %461 = vmatpush2.msra.mxu0 %v207
    %462 = vmatprep.subr.mxu0 0.0
    %463 = vmatpush2.msra.mxu0 %v206
    %464 = vmatprep.subr.mxu0 0.0
    %465 = vmatpush2.msra.mxu0 %v205
    %466 = vmatprep.subr.mxu0 0.0
    %467 = vmatpush2.msra.mxu0 %v204
    %468 = vmatprep.subr.mxu0 0.0
    %469 = vmatpush2.msra.mxu0 %v203
    %470 = vmatprep.subr.mxu0 0.0
    %471 = vmatpush2.msra.mxu0 %v202
    %472 = vmatprep.subr.mxu0 0.0
    %473 = vmatpush2.msra.mxu0 %v201
    %474 = vmatprep.subr.mxu0 0.0
    %475 = vmatpush2.msra.mxu0 %v200
    %476 = vmatprep.subr.mxu0 0.0
    %477 = vmatpush2.msra.mxu0 %v199
    %478 = vmatprep.subr.mxu0 0.0
    %479 = vmatpush2.msra.mxu0 %v198
    %480 = vmatprep.subr.mxu0 0.0
    %481 = vmatpush2.msra.mxu0 %v197
    %482 = vmatprep.subr.mxu0 0.0
    %483 = vmatpush2.msra.mxu0 %v196
    %484 = vmatprep.subr.mxu0 0.0
    %485 = vmatpush2.msra.mxu0 %v195
    %486 = vmatprep.subr.mxu0 0.0
    %487 = vmatpush2.msra.mxu0 %v194
    %488 = vmatprep.subr.mxu0 0.0
    %489 = vmatpush2.msra.mxu0 %v193
    %490 = vmatprep.mubr.f32.mxu0 %v80
    %491 = vmatmul.mubr.f32.gmra.mxu0 %v79
    %v492 = vpop.f32.mrf.mxu0
    %v493 = vadd.f32 %v423, %v492
    %v494 = vpop.f32.mrf.mxu0
    %495 = vdwg.mxu0
    %v496 = vmax.f32 %v493, 0.0
    %v497 = vld [vmem:[%s3] sm:$0xff]
    %v498 = vld [vmem:[%s3 + $0x8] sm:$0xff]
    %v499 = vld [vmem:[%s3 + $0x10] sm:$0xff]
    %v500 = vld [vmem:[%s3 + $0x18] sm:$0xff]
    %v501 = vld [vmem:[%s3 + $0x20] sm:$0xff]
    %v502 = vld [vmem:[%s3 + $0x28] sm:$0xff]
    %v503 = vld [vmem:[%s3 + $0x30] sm:$0xff]
    %v504 = vld [vmem:[%s3 + $0x38] sm:$0xff]
    %v505 = vld [vmem:[%s3 + $0x40] sm:$0xff]
    %v506 = vld [vmem:[%s3 + $0x48] sm:$0xff]
    %v507 = vld [vmem:[%s3 + $0x50] sm:$0xff]
    %v508 = vld [vmem:[%s3 + $0x58] sm:$0xff]
    %v509 = vld [vmem:[%s3 + $0x60] sm:$0xff]
    %v510 = vld [vmem:[%s3 + $0x68] sm:$0xff]
    %v511 = vld [vmem:[%s3 + $0x70] sm:$0xff]
    %v512 = vld [vmem:[%s3 + $0x78] sm:$0xff]
    %v513 = vld [vmem:[%s4] sm:$0x1]
    %v515 = vlaneseq
    %v516 = vshrl.u32 %v515, 7
    %v517 = vsub.s32 0, %v516
    %v518 = vrot.slane %v513, %v517
    %520 = vmatprep.subr.mxu0 0.0
    %521 = vmatpush1.msra.mxu0 %v512
    %522 = vmatprep.subr.mxu0 0.0
    %523 = vmatpush1.msra.mxu0 %v511
    %524 = vmatprep.subr.mxu0 0.0
    %525 = vmatpush1.msra.mxu0 %v510
    %526 = vmatprep.subr.mxu0 0.0
    %527 = vmatpush1.msra.mxu0 %v509
    %528 = vmatprep.subr.mxu0 0.0
    %529 = vmatpush1.msra.mxu0 %v508
    %530 = vmatprep.subr.mxu0 0.0
    %531 = vmatpush1.msra.mxu0 %v507
    %532 = vmatprep.subr.mxu0 0.0
    %533 = vmatpush1.msra.mxu0 %v506
    %534 = vmatprep.subr.mxu0 0.0
    %535 = vmatpush1.msra.mxu0 %v505
    %536 = vmatprep.subr.mxu0 0.0
    %537 = vmatpush1.msra.mxu0 %v504
    %538 = vmatprep.subr.mxu0 0.0
    %539 = vmatpush1.msra.mxu0 %v503
    %540 = vmatprep.subr.mxu0 0.0
    %541 = vmatpush1.msra.mxu0 %v502
    %542 = vmatprep.subr.mxu0 0.0
    %543 = vmatpush1.msra.mxu0 %v501
    %544 = vmatprep.subr.mxu0 0.0
    %545 = vmatpush1.msra.mxu0 %v500
    %546 = vmatprep.subr.mxu0 0.0
    %547 = vmatpush1.msra.mxu0 %v499
    %548 = vmatprep.subr.mxu0 0.0
    %549 = vmatpush1.msra.mxu0 %v498
    %550 = vmatprep.subr.mxu0 0.0
    %551 = vmatpush1.msra.mxu0 %v497
    %552 = vmatprep.subr.mxu0 0.0
    %553 = vmatpush2.msra.mxu0 0.0
    %554 = vmatprep.subr.mxu0 0.0
    %555 = vmatpush2.msra.mxu0 0.0
    %556 = vmatprep.subr.mxu0 0.0
    %557 = vmatpush2.msra.mxu0 0.0
    %558 = vmatprep.subr.mxu0 0.0
    %559 = vmatpush2.msra.mxu0 0.0
    %560 = vmatprep.subr.mxu0 0.0
    %561 = vmatpush2.msra.mxu0 0.0
    %562 = vmatprep.subr.mxu0 0.0
    %563 = vmatpush2.msra.mxu0 0.0
    %564 = vmatprep.subr.mxu0 0.0
    %565 = vmatpush2.msra.mxu0 0.0
    %566 = vmatprep.subr.mxu0 0.0
    %567 = vmatpush2.msra.mxu0 0.0
    %568 = vmatprep.subr.mxu0 0.0
    %569 = vmatpush2.msra.mxu0 0.0
    %570 = vmatprep.subr.mxu0 0.0
    %571 = vmatpush2.msra.mxu0 0.0
    %572 = vmatprep.subr.mxu0 0.0
    %573 = vmatpush2.msra.mxu0 0.0
    %574 = vmatprep.subr.mxu0 0.0
    %575 = vmatpush2.msra.mxu0 0.0
    %576 = vmatprep.subr.mxu0 0.0
    %577 = vmatpush2.msra.mxu0 0.0
    %578 = vmatprep.subr.mxu0 0.0
    %579 = vmatpush2.msra.mxu0 0.0
    %580 = vmatprep.subr.mxu0 0.0
    %581 = vmatpush2.msra.mxu0 0.0
    %582 = vmatprep.subr.mxu0 0.0
    %583 = vmatpush2.msra.mxu0 0.0
    %584 = vmatprep.mubr.f32.mxu0 0.0
    %585 = vmatmul.mubr.f32.gmra.mxu0 %v496
    %v586 = vpop.f32.mrf.mxu0
    %v587 = vadd.f32 %v518, %v586
    %v588 = vpop.f32.mrf.mxu0
    %589 = vdwg.mxu0
    %v590 = vmax.f32 %v587, 0.0
    %v591 = vld [vmem:[#allocation4] sm:$0xff]
    %v592 = vld [vmem:[#allocation4 + $0x8] sm:$0xff]
    %v593 = vld [vmem:[#allocation4 + $0x10] sm:$0xff]
    %v594 = vld [vmem:[#allocation4 + $0x18] sm:$0xff]
    %v595 = vld [vmem:[#allocation4 + $0x20] sm:$0xff]
    %v596 = vld [vmem:[#allocation4 + $0x28] sm:$0xff]
    %v597 = vld [vmem:[#allocation4 + $0x30] sm:$0xff]
    %v598 = vld [vmem:[#allocation4 + $0x38] sm:$0xff]
    %v599 = vld [vmem:[#allocation4 + $0x40] sm:$0xff]
    %v600 = vld [vmem:[#allocation4 + $0x48] sm:$0xff]
    %v601 = vld [vmem:[#allocation4 + $0x50] sm:$0xff]
    %v602 = vld [vmem:[#allocation4 + $0x58] sm:$0xff]
    %v603 = vld [vmem:[#allocation4 + $0x60] sm:$0xff]
    %v604 = vld [vmem:[#allocation4 + $0x68] sm:$0xff]
    %v605 = vld [vmem:[#allocation4 + $0x70] sm:$0xff]
    %v606 = vld [vmem:[#allocation4 + $0x78] sm:$0xff]
    %v607 = vld [vmem:[%s6] sm:$0x1]
    %v609 = vlaneseq
    %v610 = vshrl.u32 %v609, 7
    %v611 = vsub.s32 0, %v610
    %v612 = vrot.slane %v607, %v611
    %614 = vmatprep.subr.mxu0 0.0
    %615 = vmatpush1.msra.mxu0 %v606
    %616 = vmatprep.subr.mxu0 0.0
    %617 = vmatpush1.msra.mxu0 %v605
    %618 = vmatprep.subr.mxu0 0.0
    %619 = vmatpush1.msra.mxu0 %v604
    %620 = vmatprep.subr.mxu0 0.0
    %621 = vmatpush1.msra.mxu0 %v603
    %622 = vmatprep.subr.mxu0 0.0
    %623 = vmatpush1.msra.mxu0 %v602
    %624 = vmatprep.subr.mxu0 0.0
    %625 = vmatpush1.msra.mxu0 %v601
    %626 = vmatprep.subr.mxu0 0.0
    %627 = vmatpush1.msra.mxu0 %v600
    %628 = vmatprep.subr.mxu0 0.0
    %629 = vmatpush1.msra.mxu0 %v599
    %630 = vmatprep.subr.mxu0 0.0
    %631 = vmatpush1.msra.mxu0 %v598
    %632 = vmatprep.subr.mxu0 0.0
    %633 = vmatpush1.msra.mxu0 %v597
    %634 = vmatprep.subr.mxu0 0.0
    %635 = vmatpush1.msra.mxu0 %v596
    %636 = vmatprep.subr.mxu0 0.0
    %637 = vmatpush1.msra.mxu0 %v595
    %638 = vmatprep.subr.mxu0 0.0
    %639 = vmatpush1.msra.mxu0 %v594
    %640 = vmatprep.subr.mxu0 0.0
    %641 = vmatpush1.msra.mxu0 %v593
    %642 = vmatprep.subr.mxu0 0.0
    %643 = vmatpush1.msra.mxu0 %v592
    %644 = vmatprep.subr.mxu0 0.0
    %645 = vmatpush1.msra.mxu0 %v591
    %646 = vmatprep.subr.mxu0 0.0
    %647 = vmatpush2.msra.mxu0 0.0
    %648 = vmatprep.subr.mxu0 0.0
    %649 = vmatpush2.msra.mxu0 0.0
    %650 = vmatprep.subr.mxu0 0.0
    %651 = vmatpush2.msra.mxu0 0.0
    %652 = vmatprep.subr.mxu0 0.0
    %653 = vmatpush2.msra.mxu0 0.0
    %654 = vmatprep.subr.mxu0 0.0
    %655 = vmatpush2.msra.mxu0 0.0
    %656 = vmatprep.subr.mxu0 0.0
    %657 = vmatpush2.msra.mxu0 0.0
    %658 = vmatprep.subr.mxu0 0.0
    %659 = vmatpush2.msra.mxu0 0.0
    %660 = vmatprep.subr.mxu0 0.0
    %661 = vmatpush2.msra.mxu0 0.0
    %662 = vmatprep.subr.mxu0 0.0
    %663 = vmatpush2.msra.mxu0 0.0
    %664 = vmatprep.subr.mxu0 0.0
    %665 = vmatpush2.msra.mxu0 0.0
    %666 = vmatprep.subr.mxu0 0.0
    %667 = vmatpush2.msra.mxu0 0.0
    %668 = vmatprep.subr.mxu0 0.0
    %669 = vmatpush2.msra.mxu0 0.0
    %670 = vmatprep.subr.mxu0 0.0
    %671 = vmatpush2.msra.mxu0 0.0
    %672 = vmatprep.subr.mxu0 0.0
    %673 = vmatpush2.msra.mxu0 0.0
    %674 = vmatprep.subr.mxu0 0.0
    %675 = vmatpush2.msra.mxu0 0.0
    %676 = vmatprep.subr.mxu0 0.0
    %677 = vmatpush2.msra.mxu0 0.0
    %678 = vmatprep.mubr.f32.mxu0 0.0
    %679 = vmatmul.mubr.f32.gmra.mxu0 %v590
    %v680 = vpop.f32.mrf.mxu0
    %v681 = vadd.f32 %v612, %v680
    %v682 = vpop.f32.mrf.mxu0
    %683 = vdwg.mxu0
    %v684 = vmax.f32 %v681, 0.0
    %v685 = vld [vmem:[#allocation6] sm:$0xff]
    %v686 = vld [vmem:[#allocation6 + $0x8] sm:$0xff]
    %v687 = vld [vmem:[#allocation6 + $0x10] sm:$0xff]
    %v688 = vld [vmem:[#allocation6 + $0x18] sm:$0xff]
    %v689 = vld [vmem:[#allocation6 + $0x20] sm:$0xff]
    %v690 = vld [vmem:[#allocation6 + $0x28] sm:$0xff]
    %v691 = vld [vmem:[#allocation6 + $0x30] sm:$0xff]
    %v692 = vld [vmem:[#allocation6 + $0x38] sm:$0xff]
    %v693 = vld [vmem:[#allocation6 + $0x40] sm:$0xff]
    %v694 = vld [vmem:[#allocation6 + $0x48] sm:$0xff]
    %v695 = vld [vmem:[#allocation6 + $0x50] sm:$0xff]
    %v696 = vld [vmem:[#allocation6 + $0x58] sm:$0xff]
    %v697 = vld [vmem:[#allocation6 + $0x60] sm:$0xff]
    %v698 = vld [vmem:[#allocation6 + $0x68] sm:$0xff]
    %v699 = vld [vmem:[#allocation6 + $0x70] sm:$0xff]
    %v700 = vld [vmem:[#allocation6 + $0x78] sm:$0xff]
    %v701 = vld [vmem:[%s8] sm:$0x1]
    %v703 = vlaneseq
    %v704 = vshrl.u32 %v703, 7
    %v705 = vsub.s32 0, %v704
    %v706 = vrot.slane %v701, %v705
    %708 = vmatprep.subr.mxu0 0.0
    %709 = vmatpush1.msra.mxu0 %v700
    %710 = vmatprep.subr.mxu0 0.0
    %711 = vmatpush1.msra.mxu0 %v699
    %712 = vmatprep.subr.mxu0 0.0
    %713 = vmatpush1.msra.mxu0 %v698
    %714 = vmatprep.subr.mxu0 0.0
    %715 = vmatpush1.msra.mxu0 %v697
    %716 = vmatprep.subr.mxu0 0.0
    %717 = vmatpush1.msra.mxu0 %v696
    %718 = vmatprep.subr.mxu0 0.0
    %719 = vmatpush1.msra.mxu0 %v695
    %720 = vmatprep.subr.mxu0 0.0
    %721 = vmatpush1.msra.mxu0 %v694
    %722 = vmatprep.subr.mxu0 0.0
    %723 = vmatpush1.msra.mxu0 %v693
    %724 = vmatprep.subr.mxu0 0.0
    %725 = vmatpush1.msra.mxu0 %v692
    %726 = vmatprep.subr.mxu0 0.0
    %727 = vmatpush1.msra.mxu0 %v691
    %728 = vmatprep.subr.mxu0 0.0
    %729 = vmatpush1.msra.mxu0 %v690
    %730 = vmatprep.subr.mxu0 0.0
    %731 = vmatpush1.msra.mxu0 %v689
    %732 = vmatprep.subr.mxu0 0.0
    %733 = vmatpush1.msra.mxu0 %v688
    %734 = vmatprep.subr.mxu0 0.0
    %735 = vmatpush1.msra.mxu0 %v687
    %736 = vmatprep.subr.mxu0 0.0
    %737 = vmatpush1.msra.mxu0 %v686
    %738 = vmatprep.subr.mxu0 0.0
    %739 = vmatpush1.msra.mxu0 %v685
    %740 = vmatprep.subr.mxu0 0.0
    %741 = vmatpush2.msra.mxu0 0.0
    %742 = vmatprep.subr.mxu0 0.0
    %743 = vmatpush2.msra.mxu0 0.0
    %744 = vmatprep.subr.mxu0 0.0
    %745 = vmatpush2.msra.mxu0 0.0
    %746 = vmatprep.subr.mxu0 0.0
    %747 = vmatpush2.msra.mxu0 0.0
    %748 = vmatprep.subr.mxu0 0.0
    %749 = vmatpush2.msra.mxu0 0.0
    %750 = vmatprep.subr.mxu0 0.0
    %751 = vmatpush2.msra.mxu0 0.0
    %752 = vmatprep.subr.mxu0 0.0
    %753 = vmatpush2.msra.mxu0 0.0
    %754 = vmatprep.subr.mxu0 0.0
    %755 = vmatpush2.msra.mxu0 0.0
    %756 = vmatprep.subr.mxu0 0.0
    %757 = vmatpush2.msra.mxu0 0.0
    %758 = vmatprep.subr.mxu0 0.0
    %759 = vmatpush2.msra.mxu0 0.0
    %760 = vmatprep.subr.mxu0 0.0
    %761 = vmatpush2.msra.mxu0 0.0
    %762 = vmatprep.subr.mxu0 0.0
    %763 = vmatpush2.msra.mxu0 0.0
    %764 = vmatprep.subr.mxu0 0.0
    %765 = vmatpush2.msra.mxu0 0.0
    %766 = vmatprep.subr.mxu0 0.0
    %767 = vmatpush2.msra.mxu0 0.0
    %768 = vmatprep.subr.mxu0 0.0
    %769 = vmatpush2.msra.mxu0 0.0
    %770 = vmatprep.subr.mxu0 0.0
    %771 = vmatpush2.msra.mxu0 0.0
    %772 = vmatprep.mubr.f32.mxu0 0.0
    %773 = vmatmul.mubr.f32.gmra.mxu0 %v684
    %v774 = vpop.f32.mrf.mxu0
    %v775 = vadd.f32 %v706, %v774
    %v776 = vpop.f32.mrf.mxu0
    %777 = vdwg.mxu0
    %778 = vst [vmem:[%s9] sm:$0xff] %v775
    // Predicated region
    $region50: #{mlp_factorized_forward.1} parent=1 // pred_check
      _
    $region51: #{mlp_factorized_forward.1} parent=1 // pred_check_branch
      %780 = sbr.rel (0) target = $region53
    $region52: #{mlp_factorized_forward.1} parent=1 // pred_region
      _
    $region53: #{mlp_factorized_forward.1} parent=1 // pred_fallthru
      _
    // Predicated region
    $region54: #{mlp_factorized_forward.1} parent=1 // pred_check
      _
    $region55: #{mlp_factorized_forward.1} parent=1 // pred_check_branch
      %782 = sbr.rel (0) target = $region57
    $region56: #{mlp_factorized_forward.1} parent=1 // pred_region
      _
    $region57: #{mlp_factorized_forward.1} parent=1 // pred_fallthru
      _
    %783 = vsyncpa [#allocation3], 1
    %784 = vsyncpa [#allocation5], 1

</llo_original>
